<compile_context>
chip_gen: v5e
topology: v5e:2x2
jax: 0.10.0
libtpu: 0.0.40
codegen_flags: <defaults>
</compile_context>

<pallas_src>
import functools

import jax
import jax.numpy as jnp
import numpy as np
from jax.experimental import pallas as pl
from jax.experimental.pallas import tpu as pltpu

_VMEM_LIMIT = 32 * 1024 * 1024      # safe scoped-VMEM limit on v5e/v6e/v7x
_BLOCK_BYTES = 2 * 1024 * 1024      # ~2 MiB x-blocks for the streaming path
_FUSED_BYTES = 4 * 1024 * 1024      # x size below which the fused path is used


def _round_up(x, m):
    return (x + m - 1) // m * m


def _round_down_min(x, m):
    return max(x // m * m, m)


def _pick_tiles(R, M, itemsize):
    """Tile (rows, lanes) by byte budget; lane tile multiple of 128, rows of 8."""
    budget = max(_BLOCK_BYTES // itemsize, 8 * 128)
    r_full = _round_up(R, 8)
    m_full = _round_up(M, 128)
    tile_r = min(r_full, 512)
    tile_m = min(m_full, _round_down_min(budget // tile_r, 128))
    if tile_m >= m_full:
        # Small spatial extent: spend the remaining budget on rows instead.
        tile_m = m_full
        tile_r = min(r_full, _round_down_min(budget // tile_m, 8))
    return tile_r, tile_m


# ---------------------------------------------------------------------------
# Streaming path kernels
# ---------------------------------------------------------------------------
def _stats_kernel(x_ref, sum_ref, ssq_ref, *, m_total, mask_lanes):
    """Per-row sum / sum-of-squares over the spatial (lane) axis, accumulated
    across the spatial grid axis into resident (tile_r, 1) outputs."""
    xf = x_ref[...].astype(jnp.float32)                  # (tile_r, tile_m)
    if mask_lanes:
        tile_m = xf.shape[-1]
        lane = jax.lax.broadcasted_iota(jnp.int32, xf.shape, 1)
        valid = m_total - pl.program_id(1) * tile_m      # >= tile_m on full tiles
        xf = jnp.where(lane < valid, xf, 0.0)

    @pl.when(pl.program_id(1) == 0)
    def _():
        sum_ref[...] = jnp.zeros_like(sum_ref)
        ssq_ref[...] = jnp.zeros_like(ssq_ref)

    sum_ref[...] += jnp.sum(xf, axis=-1, keepdims=True)
    ssq_ref[...] += jnp.sum(xf * xf, axis=-1, keepdims=True)


def _norm_kernel(x_ref, ss_ref, o_ref):
    """Per-element path is a single FMA: out = x * scale + shift."""
    xf = x_ref[...].astype(jnp.float32)
    ss = ss_ref[...]                                     # (tile_r, 2) f32
    scale = ss[:, 0:1]
    shift = ss[:, 1:2]
    o_ref[...] = (xf * scale + shift).astype(o_ref.dtype)


# ---------------------------------------------------------------------------
# Fused (VMEM-resident) kernel
# ---------------------------------------------------------------------------
def _fused_kernel(mw_ref, vw_ref, x_ref, gamma_ref, beta_ref,
                  o_ref, mean_bn_ref, var_bn_ref, *, eps):
    xf = x_ref[...].astype(jnp.float32)                  # (N, C, M)
    m = jnp.float32(xf.shape[-1])
    row_sum = jnp.sum(xf, axis=-1, keepdims=True)        # (N, C, 1)
    row_ssq = jnp.sum(xf * xf, axis=-1, keepdims=True)
    mean_in = row_sum / m
    # torch Tensor.var() is unbiased (divides by m-1); clamp guards the
    # single-pass formula against tiny negative values from cancellation.
    var_in = jnp.maximum((row_ssq - row_sum * row_sum / m) / (m - 1.0), 0.0)
    temp = var_in + mean_in * mean_in
    mean_ln = jnp.mean(mean_in, axis=1, keepdims=True)   # (N, 1, 1)
    var_ln = jnp.mean(temp, axis=1, keepdims=True) - mean_ln * mean_ln
    mean_bn = jnp.mean(mean_in, axis=0, keepdims=True)   # (1, C, 1)
    var_bn = jnp.mean(temp, axis=0, keepdims=True) - mean_bn * mean_bn

    mean = mw_ref[0] * mean_in + mw_ref[1] * mean_ln + mw_ref[2] * mean_bn
    var = vw_ref[0] * var_in + vw_ref[1] * var_ln + vw_ref[2] * var_bn

    scale = gamma_ref[...] * jax.lax.rsqrt(var + eps)    # (N, C, 1)
    shift = beta_ref[...] - mean * scale
    o_ref[...] = (xf * scale + shift).astype(o_ref.dtype)
    mean_bn_ref[...] = mean_bn
    var_bn_ref[...] = var_bn


# ---------------------------------------------------------------------------
# Wrapper
# ---------------------------------------------------------------------------
def switch_norm_2d(x, weight, bias, mean_weight, var_weight,
                   running_mean, running_var,
                   eps=1e-5, momentum=0.9, training=True,
                   using_moving_average=True, force_two_pass=False):
    """SwitchNorm2d forward (using_bn=True). Returns (y, new_running_mean,
    new_running_var)."""
    N, C, H, W = x.shape
    M = H * W
    R = N * C

    mw = jax.nn.softmax(mean_weight.astype(jnp.float32))
    vw = jax.nn.softmax(var_weight.astype(jnp.float32))
    gamma3 = weight.reshape(1, C, 1).astype(jnp.float32)
    beta3 = bias.reshape(1, C, 1).astype(jnp.float32)

    x_bytes = R * M * x.dtype.itemsize
    use_fused = training and (not force_two_pass) and x_bytes <= _FUSED_BYTES

    if use_fused:
        # ---- single fused kernel: 1 read + 1 write of x --------------------
        x3 = x.reshape(N, C, M)
        y3, mean_bn3, var_bn3 = pl.pallas_call(
            functools.partial(_fused_kernel, eps=eps),
            out_shape=(jax.ShapeDtypeStruct((N, C, M), x.dtype),
                       jax.ShapeDtypeStruct((1, C, 1), jnp.float32),
                       jax.ShapeDtypeStruct((1, C, 1), jnp.float32)),
            in_specs=[pl.BlockSpec(memory_space=pltpu.MemorySpace.SMEM),
                      pl.BlockSpec(memory_space=pltpu.MemorySpace.SMEM),
                      pl.BlockSpec(memory_space=pltpu.MemorySpace.VMEM),
                      pl.BlockSpec(memory_space=pltpu.MemorySpace.VMEM),
                      pl.BlockSpec(memory_space=pltpu.MemorySpace.VMEM)],
            out_specs=(pl.BlockSpec(memory_space=pltpu.MemorySpace.VMEM),
                       pl.BlockSpec(memory_space=pltpu.MemorySpace.VMEM),
                       pl.BlockSpec(memory_space=pltpu.MemorySpace.VMEM)),
            compiler_params=pltpu.CompilerParams(vmem_limit_bytes=_VMEM_LIMIT),
        )(mw, vw, x3, gamma3, beta3)
        y = y3.reshape(N, C, H, W)
        mean_bn = mean_bn3.reshape(1, C)
        var_bn = var_bn3.reshape(1, C)
    else:
        # ---- streaming two-pass path (no padding, non-divisible grids) -----
        x2 = x.reshape(R, M)
        tile_r, tile_m = _pick_tiles(R, M, x.dtype.itemsize)
        grid = (pl.cdiv(R, tile_r), pl.cdiv(M, tile_m))

        sums, ssqs = pl.pallas_call(
            functools.partial(_stats_kernel, m_total=M,
                              mask_lanes=(M % tile_m != 0)),
            out_shape=(jax.ShapeDtypeStruct((R, 1), jnp.float32),
                       jax.ShapeDtypeStruct((R, 1), jnp.float32)),
            grid=grid,
            in_specs=[pl.BlockSpec((tile_r, tile_m), lambda r, m: (r, m))],
            out_specs=(pl.BlockSpec((tile_r, 1), lambda r, m: (r, 0)),
                       pl.BlockSpec((tile_r, 1), lambda r, m: (r, 0))),
            compiler_params=pltpu.CompilerParams(
                dimension_semantics=("parallel", "arbitrary"),
                vmem_limit_bytes=_VMEM_LIMIT),
        )(x2)

        # Tiny (N, C) cross-row combine in plain JAX.
        m = jnp.float32(M)
        row_sum = sums[:, 0].reshape(N, C)
        row_ssq = ssqs[:, 0].reshape(N, C)
        mean_in = row_sum / m
        var_in = jnp.maximum((row_ssq - row_sum * row_sum / m) / (m - 1.0), 0.0)
        temp = var_in + mean_in * mean_in
        mean_ln = jnp.mean(mean_in, axis=1, keepdims=True)
        var_ln = jnp.mean(temp, axis=1, keepdims=True) - mean_ln * mean_ln
        if training:
            mean_bn = jnp.mean(mean_in, axis=0, keepdims=True)
            var_bn = jnp.mean(temp, axis=0, keepdims=True) - mean_bn * mean_bn
        else:
            mean_bn = running_mean.reshape(1, C).astype(jnp.float32)
            var_bn = running_var.reshape(1, C).astype(jnp.float32)

        mean = mw[0] * mean_in + mw[1] * mean_ln + mw[2] * mean_bn
        var = vw[0] * var_in + vw[1] * var_ln + vw[2] * var_bn
        scale = gamma3.reshape(1, C) * jax.lax.rsqrt(var + eps)   # (N, C)
        shift = beta3.reshape(1, C) - mean * scale
        ss = jnp.stack([scale.reshape(R), shift.reshape(R)], axis=-1)  # (R, 2)

        out2 = pl.pallas_call(
            _norm_kernel,
            out_shape=jax.ShapeDtypeStruct((R, M), x.dtype),
            grid=grid,
            in_specs=[pl.BlockSpec((tile_r, tile_m), lambda r, m: (r, m)),
                      pl.BlockSpec((tile_r, 2), lambda r, m: (r, 0))],
            out_specs=pl.BlockSpec((tile_r, tile_m), lambda r, m: (r, m)),
            compiler_params=pltpu.CompilerParams(
                dimension_semantics=("parallel", "parallel"),
                vmem_limit_bytes=_VMEM_LIMIT),
        )(x2, ss)
        y = out2.reshape(N, C, H, W)

    # Running-buffer update reuses the kernel statistics (no extra HBM sweep).
    if training:
        mean_bn3 = mean_bn.reshape(1, C, 1)
        var_bn3 = var_bn.reshape(1, C, 1)
        if using_moving_average:
            new_rm = momentum * running_mean + (1.0 - momentum) * mean_bn3
            new_rv = momentum * running_var + (1.0 - momentum) * var_bn3
        else:
            new_rm = running_mean + mean_bn3
            new_rv = running_var + mean_bn3 ** 2 + var_bn3
    else:
        new_rm, new_rv = running_mean, running_var
    return y, new_rm, new_rv


# ---------------------------------------------------------------------------
# Pure-JAX reference (replica of the PyTorch forward, using_bn=True)
# ---------------------------------------------------------------------------
def _reference(x, weight, bias, mean_weight, var_weight,
               running_mean, running_var, eps=1e-5, training=True):
    N, C, H, W = x.shape
    xr = x.reshape(N, C, -1).astype(jnp.float32)
    mean_in = xr.mean(-1, keepdims=True)
    var_in = xr.var(-1, keepdims=True, ddof=1)
    mean_ln = mean_in.mean(1, keepdims=True)
    temp = var_in + mean_in ** 2
    var_ln = temp.mean(1, keepdims=True) - mean_ln ** 2
    if training:
        mean_bn = mean_in.mean(0, keepdims=True)
        var_bn = temp.mean(0, keepdims=True) - mean_bn ** 2
    else:
        mean_bn = running_mean.reshape(1, C, 1).astype(jnp.float32)
        var_bn = running_var.reshape(1, C, 1).astype(jnp.float32)
    mw = jax.nn.softmax(mean_weight.astype(jnp.float32))
    vw = jax.nn.softmax(var_weight.astype(jnp.float32))
    mean = mw[0] * mean_in + mw[1] * mean_ln + mw[2] * mean_bn
    var = vw[0] * var_in + vw[1] * var_ln + vw[2] * var_bn
    xn = (xr - mean) / jnp.sqrt(var + eps)
    return xn.reshape(N, C, H, W) * weight + bias


def _check(name, x, weight, bias, mean_weight, var_weight, rm, rv,
           training=True, force_two_pass=False):
    y, _, _ = switch_norm_2d(x, weight, bias, mean_weight, var_weight, rm, rv,
                             eps=1e-5, momentum=0.9, training=training,
                             using_moving_average=True,
                             force_two_pass=force_two_pass)
    jax.block_until_ready(y)
    y_ref = _reference(x, weight, bias, mean_weight, var_weight, rm, rv,
                       eps=1e-5, training=training)
    np.testing.assert_allclose(np.asarray(y), np.asarray(y_ref),
                               rtol=1e-4, atol=1e-4, err_msg=name)


if __name__ == "__main__":
    key = jax.random.PRNGKey(0)

    # --- case 1: aligned shape, fused fast path (training) -------------------
    N, C, H, W = 2, 4, 16, 16
    weight = jnp.ones((1, C, 1, 1), jnp.float32)
    bias = jnp.zeros((1, C, 1, 1), jnp.float32)
    mean_weight = jnp.ones((3,), jnp.float32)
    var_weight = jnp.ones((3,), jnp.float32)
    rm = jnp.zeros((1, C, 1), jnp.float32)
    rv = jnp.zeros((1, C, 1), jnp.float32)
    k0, k1, k2 = jax.random.split(key, 3)
    x = jax.random.normal(k0, (N, C, H, W), jnp.float32)
    _check("fused-train", x, weight, bias, mean_weight, var_weight, rm, rv,
           training=True, force_two_pass=False)

    # --- case 2: same shape through the streaming two-pass path --------------
    _check("two-pass-train", x, weight, bias, mean_weight, var_weight, rm, rv,
           training=True, force_two_pass=True)

    # --- case 3: ragged shape (non-divisible grids + lane masking) -----------
    N2, C2, H2, W2 = 3, 5, 9, 11
    weight2 = jnp.ones((1, C2, 1, 1), jnp.float32)
    bias2 = jnp.zeros((1, C2, 1, 1), jnp.float32)
    rm2 = jnp.zeros((1, C2, 1), jnp.float32)
    rv2 = jnp.zeros((1, C2, 1), jnp.float32)
    x2 = jax.random.normal(k1, (N2, C2, H2, W2), jnp.float32) * 1.7 + 0.3
    _check("two-pass-ragged", x2, weight2, bias2, mean_weight, var_weight,
           rm2, rv2, training=True, force_two_pass=True)

    # --- case 4: eval mode (bn stats from running buffers) -------------------
    rm_e = jax.random.normal(k2, (1, C, 1), jnp.float32) * 0.1
    rv_e = jnp.abs(jax.random.normal(k2, (1, C, 1), jnp.float32)) + 0.5
    _check("eval", x, weight, bias, mean_weight, var_weight, rm_e, rv_e,
           training=False, force_two_pass=False)

    print("KERNEL_OK")
</pallas_src>

<mosaic_0001>
module attributes {stable_mosaic.version = 11 : i64} {
  func.func @_fused_kernel(%arg0: memref<3xf32, #tpu.memory_space<smem>>, %arg1: memref<3xf32, #tpu.memory_space<smem>>, %arg2: memref<2x4x256xf32, #tpu.memory_space<vmem>>, %arg3: memref<1x4x1xf32, #tpu.memory_space<vmem>>, %arg4: memref<1x4x1xf32, #tpu.memory_space<vmem>>, %arg5: memref<2x4x256xf32, #tpu.memory_space<vmem>>, %arg6: memref<1x4x1xf32, #tpu.memory_space<vmem>>, %arg7: memref<1x4x1xf32, #tpu.memory_space<vmem>>) attributes {dimension_semantics = [], scalar_prefetch = 0 : i64, scratch_operands = 0 : i64, tpu.core_type = #tpu.core_type<tc>} {
    %c0 = arith.constant 0 : index
    %c0_0 = arith.constant 0 : index
    %c0_1 = arith.constant 0 : index
    %0 = vector.load %arg2[%c0, %c0_0, %c0_1] : memref<2x4x256xf32, #tpu.memory_space<vmem>>, vector<2x4x256xf32>
    %cst = arith.constant dense<0.000000e+00> : vector<2x4xf32>
    %1 = vector.multi_reduction <add>, %0, %cst [2] : vector<2x4x256xf32> to vector<2x4xf32>
    %2 = vector.shape_cast %1 : vector<2x4xf32> to vector<2x4x1xf32>
    %3 = arith.mulf %0, %0 : vector<2x4x256xf32>
    %cst_2 = arith.constant dense<0.000000e+00> : vector<2x4xf32>
    %4 = vector.multi_reduction <add>, %3, %cst_2 [2] : vector<2x4x256xf32> to vector<2x4xf32>
    %5 = vector.shape_cast %4 : vector<2x4xf32> to vector<2x4x1xf32>
    %cst_3 = arith.constant 2.560000e+02 : f32
    %6 = vector.broadcast %cst_3 : f32 to vector<2x4x1xf32>
    %7 = arith.divf %2, %6 : vector<2x4x1xf32>
    %8 = arith.mulf %2, %2 : vector<2x4x1xf32>
    %cst_4 = arith.constant 2.560000e+02 : f32
    %9 = vector.broadcast %cst_4 : f32 to vector<2x4x1xf32>
    %10 = arith.divf %8, %9 : vector<2x4x1xf32>
    %11 = arith.subf %5, %10 : vector<2x4x1xf32>
    %cst_5 = arith.constant 2.560000e+02 : f32
    %cst_6 = arith.constant 1.000000e+00 : f32
    %12 = arith.subf %cst_5, %cst_6 : f32
    %13 = vector.broadcast %12 : f32 to vector<2x4x1xf32>
    %14 = arith.divf %11, %13 : vector<2x4x1xf32>
    %cst_7 = arith.constant 0.000000e+00 : f32
    %15 = vector.broadcast %cst_7 : f32 to vector<2x4x1xf32>
    %16 = arith.maximumf %14, %15 : vector<2x4x1xf32>
    %17 = arith.mulf %7, %7 : vector<2x4x1xf32>
    %18 = arith.addf %16, %17 : vector<2x4x1xf32>
    %cst_8 = arith.constant dense<0.000000e+00> : vector<2x1xf32>
    %19 = vector.multi_reduction <add>, %7, %cst_8 [1] : vector<2x4x1xf32> to vector<2x1xf32>
    %20 = vector.shape_cast %19 : vector<2x1xf32> to vector<2x1x1xf32>
    %cst_9 = arith.constant 4.000000e+00 : f32
    %21 = vector.broadcast %cst_9 : f32 to vector<2x1x1xf32>
    %22 = arith.divf %20, %21 : vector<2x1x1xf32>
    %cst_10 = arith.constant dense<0.000000e+00> : vector<2x1xf32>
    %23 = vector.multi_reduction <add>, %18, %cst_10 [1] : vector<2x4x1xf32> to vector<2x1xf32>
    %24 = vector.shape_cast %23 : vector<2x1xf32> to vector<2x1x1xf32>
    %cst_11 = arith.constant 4.000000e+00 : f32
    %25 = vector.broadcast %cst_11 : f32 to vector<2x1x1xf32>
    %26 = arith.divf %24, %25 : vector<2x1x1xf32>
    %27 = arith.mulf %22, %22 : vector<2x1x1xf32>
    %28 = arith.subf %26, %27 : vector<2x1x1xf32>
    %cst_12 = arith.constant dense<0.000000e+00> : vector<4x1xf32>
    %29 = vector.multi_reduction <add>, %7, %cst_12 [0] : vector<2x4x1xf32> to vector<4x1xf32>
    %30 = vector.shape_cast %29 : vector<4x1xf32> to vector<1x4x1xf32>
    %cst_13 = arith.constant 2.000000e+00 : f32
    %31 = vector.broadcast %cst_13 : f32 to vector<1x4x1xf32>
    %32 = arith.divf %30, %31 : vector<1x4x1xf32>
    %cst_14 = arith.constant dense<0.000000e+00> : vector<4x1xf32>
    %33 = vector.multi_reduction <add>, %18, %cst_14 [0] : vector<2x4x1xf32> to vector<4x1xf32>
    %34 = vector.shape_cast %33 : vector<4x1xf32> to vector<1x4x1xf32>
    %cst_15 = arith.constant 2.000000e+00 : f32
    %35 = vector.broadcast %cst_15 : f32 to vector<1x4x1xf32>
    %36 = arith.divf %34, %35 : vector<1x4x1xf32>
    %37 = arith.mulf %32, %32 : vector<1x4x1xf32>
    %38 = arith.subf %36, %37 : vector<1x4x1xf32>
    %c0_16 = arith.constant 0 : index
    %39 = memref.load %arg0[%c0_16] : memref<3xf32, #tpu.memory_space<smem>>
    %40 = vector.broadcast %39 : f32 to vector<2x4x1xf32>
    %41 = arith.mulf %40, %7 : vector<2x4x1xf32>
    %c1 = arith.constant 1 : index
    %42 = memref.load %arg0[%c1] : memref<3xf32, #tpu.memory_space<smem>>
    %43 = vector.broadcast %42 : f32 to vector<2x1x1xf32>
    %44 = arith.mulf %43, %22 : vector<2x1x1xf32>
    %45 = vector.broadcast %44 : vector<2x1x1xf32> to vector<2x4x1xf32>
    %46 = arith.addf %41, %45 : vector<2x4x1xf32>
    %c2 = arith.constant 2 : index
    %47 = memref.load %arg0[%c2] : memref<3xf32, #tpu.memory_space<smem>>
    %48 = vector.broadcast %47 : f32 to vector<1x4x1xf32>
    %49 = arith.mulf %48, %32 : vector<1x4x1xf32>
    %50 = vector.broadcast %49 : vector<1x4x1xf32> to vector<2x4x1xf32>
    %51 = arith.addf %46, %50 : vector<2x4x1xf32>
    %c0_17 = arith.constant 0 : index
    %52 = memref.load %arg1[%c0_17] : memref<3xf32, #tpu.memory_space<smem>>
    %53 = vector.broadcast %52 : f32 to vector<2x4x1xf32>
    %54 = arith.mulf %53, %16 : vector<2x4x1xf32>
    %c1_18 = arith.constant 1 : index
    %55 = memref.load %arg1[%c1_18] : memref<3xf32, #tpu.memory_space<smem>>
    %56 = vector.broadcast %55 : f32 to vector<2x1x1xf32>
    %57 = arith.mulf %56, %28 : vector<2x1x1xf32>
    %58 = vector.broadcast %57 : vector<2x1x1xf32> to vector<2x4x1xf32>
    %59 = arith.addf %54, %58 : vector<2x4x1xf32>
    %c2_19 = arith.constant 2 : index
    %60 = memref.load %arg1[%c2_19] : memref<3xf32, #tpu.memory_space<smem>>
    %61 = vector.broadcast %60 : f32 to vector<1x4x1xf32>
    %62 = arith.mulf %61, %38 : vector<1x4x1xf32>
    %63 = vector.broadcast %62 : vector<1x4x1xf32> to vector<2x4x1xf32>
    %64 = arith.addf %59, %63 : vector<2x4x1xf32>
    %c0_20 = arith.constant 0 : index
    %c0_21 = arith.constant 0 : index
    %c0_22 = arith.constant 0 : index
    %65 = vector.load %arg3[%c0_20, %c0_21, %c0_22] : memref<1x4x1xf32, #tpu.memory_space<vmem>>, vector<1x4x1xf32>
    %cst_23 = arith.constant 9.99999974E-6 : f32
    %66 = vector.broadcast %cst_23 : f32 to vector<2x4x1xf32>
    %67 = arith.addf %64, %66 : vector<2x4x1xf32>
    %68 = math.rsqrt %67 : vector<2x4x1xf32>
    %69 = vector.broadcast %65 : vector<1x4x1xf32> to vector<2x4x1xf32>
    %70 = arith.mulf %69, %68 : vector<2x4x1xf32>
    %c0_24 = arith.constant 0 : index
    %c0_25 = arith.constant 0 : index
    %c0_26 = arith.constant 0 : index
    %71 = vector.load %arg4[%c0_24, %c0_25, %c0_26] : memref<1x4x1xf32, #tpu.memory_space<vmem>>, vector<1x4x1xf32>
    %72 = arith.mulf %51, %70 : vector<2x4x1xf32>
    %73 = vector.broadcast %71 : vector<1x4x1xf32> to vector<2x4x1xf32>
    %74 = arith.subf %73, %72 : vector<2x4x1xf32>
    %75 = vector.broadcast %70 : vector<2x4x1xf32> to vector<2x4x256xf32>
    %76 = arith.mulf %0, %75 : vector<2x4x256xf32>
    %77 = vector.broadcast %74 : vector<2x4x1xf32> to vector<2x4x256xf32>
    %78 = arith.addf %76, %77 : vector<2x4x256xf32>
    %c0_27 = arith.constant 0 : index
    %c0_28 = arith.constant 0 : index
    %c0_29 = arith.constant 0 : index
    %79 = vector.load %arg5[%c0_27, %c0_28, %c0_29] : memref<2x4x256xf32, #tpu.memory_space<vmem>>, vector<2x4x256xf32>
    tpu.vector_store %arg5[%c0_27, %c0_28, %c0_29], %78 {strides = array<i32>} : memref<2x4x256xf32, #tpu.memory_space<vmem>>, vector<2x4x256xf32>,
    %c0_30 = arith.constant 0 : index
    %c0_31 = arith.constant 0 : index
    %c0_32 = arith.constant 0 : index
    %80 = vector.load %arg6[%c0_30, %c0_31, %c0_32] : memref<1x4x1xf32, #tpu.memory_space<vmem>>, vector<1x4x1xf32>
    tpu.vector_store %arg6[%c0_30, %c0_31, %c0_32], %32 {strides = array<i32>} : memref<1x4x1xf32, #tpu.memory_space<vmem>>, vector<1x4x1xf32>,
    %c0_33 = arith.constant 0 : index
    %c0_34 = arith.constant 0 : index
    %c0_35 = arith.constant 0 : index
    %81 = vector.load %arg7[%c0_33, %c0_34, %c0_35] : memref<1x4x1xf32, #tpu.memory_space<vmem>>, vector<1x4x1xf32>
    tpu.vector_store %arg7[%c0_33, %c0_34, %c0_35], %38 {strides = array<i32>} : memref<1x4x1xf32, #tpu.memory_space<vmem>>, vector<1x4x1xf32>,
    return
  }
}

</mosaic_0001>

<llo_original>
// kernel: tpu_custom_call.1
$region0: #{tpu_custom_call.1}
  #allocation0 [shape = 'u32[]', space=smem, size = 0x4, offset = 0x4, fixed_abs, tag = 'smem constant byte address 0x4 - core index']
  #allocation1 [shape = 'u32[72,128]{1,0:T(1,128)}', space=vmem, size = 0x9000, scoped, tag = 'internal scratch']
  %s0 = inlined_call_operand.vmem [shape: f32[3], index: 0, kind: input, shape index: {}]
  %s1 = inlined_call_operand.vmem [shape: f32[3], index: 1, kind: input, shape index: {}]
  %s2 = inlined_call_operand.hbm [shape: f32[2,4,256], index: 2, kind: input, shape index: {}]
  %s3 = inlined_call_operand.vmem [shape: f32[1,4,1], index: 3, kind: input, shape index: {}]
  %s4 = inlined_call_operand.vmem [shape: f32[1,4,1], index: 4, kind: input, shape index: {}]
  %s5 = inlined_call_operand.hbm [shape: f32[2,4,256], index: 5, kind: output, shape index: {0}]
  %s6 = inlined_call_operand.vmem [shape: f32[1,4,1], index: 6, kind: output, shape index: {1}]
  %s7 = inlined_call_operand.vmem [shape: f32[1,4,1], index: 7, kind: output, shape index: {2}]
  %8 = xla_tuple %s5, %s6, %s7
  %s9 = sld [smem:[#allocation0]]
  $region58: #{tpu_custom_call.1} parent=0
    _
  %s11 = ssub.s32 1, %s9
  %s12 = scalar_select 0, %s11, %s9
  $region1: #{tpu_custom_call.1} parent=0
    #allocation2 [shape = 'u8[512]{0}', space=smem, size = 0x200, scoped, tag = 'input window, operand 0, single buffered']
    #allocation3 [shape = 's32[1]{0}', space=sflag, size = 0x4, scoped, tag = 'scoped memory for tpu_custom_call.1']
    #allocation4 [shape = 's32[1]{0}', space=sflag, size = 0x4, scoped, tag = 'scoped memory for tpu_custom_call.1']
    #allocation5 [shape = 's32[1]{0}', space=sflag, size = 0x4, scoped, tag = 'scoped memory for tpu_custom_call.1']
    #allocation6 [shape = 'u8[512]{0}', space=smem, size = 0x200, scoped, tag = 'input window, operand 1, single buffered']
    #allocation7 [shape = 's32[1]{0}', space=sflag, size = 0x4, scoped, tag = 'scoped memory for tpu_custom_call.1']
    #allocation8 [shape = 'u8[8192]{0}', space=vmem, size = 0x2000, scoped, tag = 'input window, operand 2, single buffered']
    #allocation9 [shape = 'u8[8192]{0}', space=vmem, size = 0x2000, scoped, tag = 'output window, operand 0, single buffered']
    %13 = vsyncpa [#allocation5], 0
    %14 = vsyncpa [#allocation7], 0
    %15 = vsyncpa [#allocation3], 0
    %16 = vsyncpa [#allocation4], 0
    // Predicated region
    $region2: #{tpu_custom_call.1} parent=1 // pred_check
      _
    $region3: #{tpu_custom_call.1} parent=1 // pred_check_branch
      %18 = sbr.rel (0) target = $region5
    $region4: #{tpu_custom_call.1} parent=1 // pred_region
      %20 = vsyncadd [#allocation5], 0
      %s22 = sshll.u32 %s0, 4
      %s23 = int_to_ptr.vmem [resolvable:$true] %s22
      %25 = dma.vmem_to_smem %s23, 16, [#allocation2], [#allocation5]
    $region5: #{tpu_custom_call.1} parent=1 // pred_fallthru
      _
    // Predicated region
    $region6: #{tpu_custom_call.1} parent=1 // pred_check
      _
    $region7: #{tpu_custom_call.1} parent=1 // pred_check_branch
      %27 = sbr.rel (0) target = $region9
    $region8: #{tpu_custom_call.1} parent=1 // pred_region
      %29 = vsyncadd [#allocation7], 0
      %s31 = sshll.u32 %s1, 4
      %s32 = int_to_ptr.vmem [resolvable:$true] %s31
      %34 = dma.vmem_to_smem %s32, 16, [#allocation6], [#allocation7]
    $region9: #{tpu_custom_call.1} parent=1 // pred_fallthru
      _
    // Predicated region
    $region10: #{tpu_custom_call.1} parent=1 // pred_check
      _
    $region11: #{tpu_custom_call.1} parent=1 // pred_check_branch
      %36 = sbr.rel (0) target = $region13
    $region12: #{tpu_custom_call.1} parent=1 // pred_region
      %38 = vsyncadd [#allocation3], 0
      %s39 = sshll.u32 %s2, 4
      %s40 = int_to_ptr.hbm [resolvable:$true] %s39
      %s41 = sshll.u32 [#allocation8], 4
      %s42 = int_to_ptr.vmem [resolvable:$true] %s41
      %47 = dma.hbm_to_vmem [thread:$0]  %s40, 256, %s42, [#allocation3], 128, 128, 8
    $region13: #{tpu_custom_call.1} parent=1 // pred_fallthru
      _
    // Predicated region
    $region14: #{tpu_custom_call.1} parent=1 // pred_check
      _
    $region15: #{tpu_custom_call.1} parent=1 // pred_check_branch
      %49 = sbr.rel (0) target = $region17
    $region16: #{tpu_custom_call.1} parent=1 // pred_region
      _
    $region17: #{tpu_custom_call.1} parent=1 // pred_fallthru
      _
    // Predicated region
    $region18: #{tpu_custom_call.1} parent=1 // pred_check
      _
    $region19: #{tpu_custom_call.1} parent=1 // pred_check_branch
      %51 = sbr.rel (0) target = $region21
    $region20: #{tpu_custom_call.1} parent=1 // pred_region
      _
    $region21: #{tpu_custom_call.1} parent=1 // pred_fallthru
      _
    // Predicated region
    $region22: #{tpu_custom_call.1} parent=1 // pred_check
      _
    $region23: #{tpu_custom_call.1} parent=1 // pred_check_branch
      %53 = sbr.rel (0) target = $region25
    $region24: #{tpu_custom_call.1} parent=1 // pred_region
      %55 = dma.done [#allocation5], 16
    $region25: #{tpu_custom_call.1} parent=1 // pred_fallthru
      _
    // Predicated region
    $region26: #{tpu_custom_call.1} parent=1 // pred_check
      _
    $region27: #{tpu_custom_call.1} parent=1 // pred_check_branch
      %57 = sbr.rel (0) target = $region29
    $region28: #{tpu_custom_call.1} parent=1 // pred_region
      %59 = dma.done [#allocation7], 16
    $region29: #{tpu_custom_call.1} parent=1 // pred_fallthru
      _
    // Predicated region
    $region30: #{tpu_custom_call.1} parent=1 // pred_check
      _
    $region31: #{tpu_custom_call.1} parent=1 // pred_check_branch
      %61 = sbr.rel (0) target = $region33
    $region32: #{tpu_custom_call.1} parent=1 // pred_region
      %63 = dma.done [#allocation3], 256
    $region33: #{tpu_custom_call.1} parent=1 // pred_fallthru
      _
    %64 = sfence
    %v65 = vld [vmem:[#allocation8] sm:$0xff]
    %v66 = vld [vmem:[#allocation8 + $0x8] sm:$0xff]
    %69 = vst [vmem:[#allocation1] ss:$2 sm:$0xff] %v65
    %v70 = vld.sshfl [vmem:[#allocation1] sm:$0xff pattern:$0x75316420]
    %v71 = vld.sshfl [vmem:[#allocation1 + $0x8] sm:$0xff pattern:$0x75316420]
    %s72 = scalar_lea.vmem [#allocation1], 16
    %73 = vst [vmem:[%s72] ss:$2 sm:$0xff] %v66
    %v74 = vld.sshfl [vmem:[#allocation1 + $0x10] sm:$0xff pattern:$0x75316420]
    %v75 = vld.sshfl [vmem:[#allocation1 + $0x18] sm:$0xff pattern:$0x75316420]
    %vm80 = vcmask 1043456
    %v81 = vsel %vm80, %v70, 0.0
    %v82 = vsel %vm80, %v71, 0.0
    %v83 = vadd.f32 %v81, %v82
    %84 = vadd.xlane.f32.xlu0 %v83
    %v85 = vpop.xlane.xlu0 %84
    %v86 = vsel %vm80, %v74, 0.0
    %v87 = vsel %vm80, %v75, 0.0
    %v88 = vadd.f32 %v86, %v87
    %89 = vadd.xlane.f32.xlu0 %v88
    %v90 = vpop.xlane.xlu0 %89
    %v91 = vmul.f32 %v65, %v65
    %v92 = vmul.f32 %v66, %v66
    %95 = vst [vmem:[#allocation1] ss:$2 sm:$0xff] %v91
    %v96 = vld.sshfl [vmem:[#allocation1] sm:$0xff pattern:$0x75316420]
    %v97 = vld.sshfl [vmem:[#allocation1 + $0x8] sm:$0xff pattern:$0x75316420]
    %s98 = scalar_lea.vmem [#allocation1], 16
    %99 = vst [vmem:[%s98] ss:$2 sm:$0xff] %v92
    %v100 = vld.sshfl [vmem:[#allocation1 + $0x10] sm:$0xff pattern:$0x75316420]
    %v101 = vld.sshfl [vmem:[#allocation1 + $0x18] sm:$0xff pattern:$0x75316420]
    %v106 = vsel %vm80, %v96, 0.0
    %v107 = vsel %vm80, %v97, 0.0
    %v108 = vadd.f32 %v106, %v107
    %109 = vadd.xlane.f32.xlu0 %v108
    %v110 = vpop.xlane.xlu0 %109
    %v111 = vsel %vm80, %v100, 0.0
    %v112 = vsel %vm80, %v101, 0.0
    %v113 = vadd.f32 %v111, %v112
    %114 = vadd.xlane.f32.xlu0 %v113
    %v115 = vpop.xlane.xlu0 %114
    %v116 = vrcp.pop 256.0
    %v117 = vmul.f32 256.0, %v116
    %v118 = vsub.f32 1.0, %v117
    %v119 = vmul.f32 %v116, %v118
    %v120 = vadd.f32 %v116, %v119
    %vm121 = vweird.f32 %v116
    %v122 = vsel %vm121, %v116, %v120
    %v123 = vmul.f32 %v85, %v122
    %v124 = vmul.f32 %v90, %v122
    %v125 = vmul.f32 %v85, %v85
    %v126 = vmul.f32 %v90, %v90
    %v127 = vmul.f32 %v125, %v122
    %v128 = vmul.f32 %v126, %v122
    %v129 = vsub.f32 %v110, %v127
    %v130 = vsub.f32 %v115, %v128
    %v131 = vrcp.pop 255.0
    %v132 = vmul.f32 255.0, %v131
    %v133 = vsub.f32 1.0, %v132
    %v134 = vmul.f32 %v131, %v133
    %v135 = vadd.f32 %v131, %v134
    %vm136 = vweird.f32 %v131
    %v137 = vsel %vm136, %v131, %v135
    %v138 = vmul.f32 %v129, %v137
    %v139 = vmul.f32 %v130, %v137
    %v140 = vmax.f32 %v138, 0.0
    %v141 = vmax.f32 %v139, 0.0
    %v142 = vmul.f32 %v123, %v123
    %v143 = vmul.f32 %v124, %v124
    %v144 = vadd.f32 %v140, %v142
    %v145 = vadd.f32 %v141, %v143
    %v146 = vsel %vm80, %v123, 0.0
    %v147 = vrot.slane %v146, 4
    %v148 = vadd.f32 %v146, %v147
    %v149 = vrot.slane %v148, 2
    %v150 = vadd.f32 %v148, %v149
    %v151 = vrot.slane %v150, 1
    %v152 = vadd.f32 %v150, %v151
    %v153 = vsel %vm80, %v124, 0.0
    %v154 = vrot.slane %v153, 4
    %v155 = vadd.f32 %v153, %v154
    %v156 = vrot.slane %v155, 2
    %v157 = vadd.f32 %v155, %v156
    %v158 = vrot.slane %v157, 1
    %v159 = vadd.f32 %v157, %v158
    %v160 = vrcp.pop 4.0
    %v161 = vmul.f32 4.0, %v160
    %v162 = vsub.f32 1.0, %v161
    %v163 = vmul.f32 %v160, %v162
    %v164 = vadd.f32 %v160, %v163
    %vm165 = vweird.f32 %v160
    %v166 = vsel %vm165, %v160, %v164
    %v167 = vmul.f32 %v152, %v166
    %v168 = vmul.f32 %v159, %v166
    %v169 = vsel %vm80, %v144, 0.0
    %v170 = vrot.slane %v169, 4
    %v171 = vadd.f32 %v169, %v170
    %v172 = vrot.slane %v171, 2
    %v173 = vadd.f32 %v171, %v172
    %v174 = vrot.slane %v173, 1
    %v175 = vadd.f32 %v173, %v174
    %v176 = vsel %vm80, %v145, 0.0
    %v177 = vrot.slane %v176, 4
    %v178 = vadd.f32 %v176, %v177
    %v179 = vrot.slane %v178, 2
    %v180 = vadd.f32 %v178, %v179
    %v181 = vrot.slane %v180, 1
    %v182 = vadd.f32 %v180, %v181
    %v183 = vmul.f32 %v175, %v166
    %v184 = vmul.f32 %v182, %v166
    %v185 = vmul.f32 %v167, %v167
    %v186 = vmul.f32 %v168, %v168
    %v187 = vsub.f32 %v183, %v185
    %v188 = vsub.f32 %v184, %v186
    %v189 = vadd.f32 %v146, %v153
    %v190 = vrcp.pop 2.0
    %v191 = vmul.f32 2.0, %v190
    %v192 = vsub.f32 1.0, %v191
    %v193 = vmul.f32 %v190, %v192
    %v194 = vadd.f32 %v190, %v193
    %vm195 = vweird.f32 %v190
    %v196 = vsel %vm195, %v190, %v194
    %v197 = vmul.f32 %v189, %v196
    %v198 = vadd.f32 %v169, %v176
    %v199 = vmul.f32 %v198, %v196
    %v200 = vmul.f32 %v197, %v197
    %v201 = vsub.f32 %v199, %v200
    %s202 = sld [smem:[#allocation2]]
    %v203 = vstv %s202
    %v204 = vmul.f32 %v203, %v123
    %v205 = vmul.f32 %v203, %v124
    %s206 = sld [smem:[#allocation2 + $0x1]]
    %v207 = vstv %s206
    %v208 = vmul.f32 %v207, %v167
    %v209 = vmul.f32 %v207, %v168
    %v210 = vadd.f32 %v204, %v208
    %v211 = vadd.f32 %v205, %v209
    %s212 = sld [smem:[#allocation2 + $0x2]]
    %v213 = vstv %s212
    %v214 = vmul.f32 %v213, %v197
    %v215 = vadd.f32 %v210, %v214
    %v216 = vadd.f32 %v211, %v214
    %s217 = sld [smem:[#allocation6]]
    %v218 = vstv %s217
    %v219 = vmul.f32 %v218, %v140
    %v220 = vmul.f32 %v218, %v141
    %s221 = sld [smem:[#allocation6 + $0x1]]
    %v222 = vstv %s221
    %v223 = vmul.f32 %v222, %v187
    %v224 = vmul.f32 %v222, %v188
    %v225 = vadd.f32 %v219, %v223
    %v226 = vadd.f32 %v220, %v224
    %s227 = sld [smem:[#allocation6 + $0x2]]
    %v228 = vstv %s227
    %v229 = vmul.f32 %v228, %v201
    %v230 = vadd.f32 %v225, %v229
    %v231 = vadd.f32 %v226, %v229
    %v232 = vld [vmem:[%s3] sm:$0xf]
    %v233 = vadd.f32 %v230, 1e-05
    %v234 = vadd.f32 %v231, 1e-05
    %v235 = vrsqrt.pop %v233
    %v236 = vmul.f32 %v235, %v233
    %v237 = vmul.f32 %v236, %v235
    %v238 = vmul.f32 0.5, %v237
    %v239 = vsub.f32 1.5, %v238
    %v240 = vmul.f32 %v235, %v239
    %vm241 = vweird.f32 %v233
    %vm242 = vweird.f32 %v235
    %vm243 = vmor %vm241, %vm242
    %v244 = vsel %vm243, %v235, %v240
    %v245 = vrsqrt.pop %v234
    %v246 = vmul.f32 %v245, %v234
    %v247 = vmul.f32 %v246, %v245
    %v248 = vmul.f32 0.5, %v247
    %v249 = vsub.f32 1.5, %v248
    %v250 = vmul.f32 %v245, %v249
    %vm251 = vweird.f32 %v234
    %vm252 = vweird.f32 %v245
    %vm253 = vmor %vm251, %vm252
    %v254 = vsel %vm253, %v245, %v250
    %v255 = vmul.f32 %v232, %v244
    %v256 = vmul.f32 %v232, %v254
    %v257 = vld [vmem:[%s4] sm:$0xf]
    %v258 = vmul.f32 %v215, %v255
    %v259 = vmul.f32 %v216, %v256
    %v260 = vsub.f32 %v257, %v258
    %v261 = vsub.f32 %v257, %v259
    %263 = vset.pattern.permute.xlu0 0
    %264 = vperm.xlu0 %263, %v255
    %v265 = vpop.permute.xlu0 %264
    %267 = vset.pattern.permute.xlu0 0
    %268 = vperm.xlu0 %267, %v256
    %v269 = vpop.permute.xlu0 %268
    %v271 = vunpack.c.l.s4 839922192
    %v272 = vunpack.c.0.s8 %v271
    %v273 = vperm.slane %v265, %v272
    %v275 = vunpack.c.l.s4 839922192
    %v276 = vunpack.c.0.s8 %v275
    %v277 = vperm.slane %v269, %v276
    %v280 = vmul.f32 %v65, %v273
    %v281 = vmul.f32 %v66, %v277
    %283 = vset.pattern.permute.xlu0 0
    %284 = vperm.xlu0 %283, %v260
    %v285 = vpop.permute.xlu0 %284
    %287 = vset.pattern.permute.xlu0 0
    %288 = vperm.xlu0 %287, %v261
    %v289 = vpop.permute.xlu0 %288
    %v291 = vunpack.c.l.s4 839922192
    %v292 = vunpack.c.0.s8 %v291
    %v293 = vperm.slane %v285, %v292
    %v295 = vunpack.c.l.s4 839922192
    %v296 = vunpack.c.0.s8 %v295
    %v297 = vperm.slane %v289, %v296
    %v300 = vadd.f32 %v280, %v293
    %v301 = vadd.f32 %v281, %v297
    %302 = vst [vmem:[#allocation9] sm:$0xff] %v300
    %303 = vst [vmem:[#allocation9 + $0x8] sm:$0xff] %v301
    %vm304 = vcmask 3072
    %305 = vst.msk [vmem:[%s6] sm:$0xf] %vm304, %v197
    %306 = vst.msk [vmem:[%s7] sm:$0xf] %vm304, %v201
    // Predicated region
    $region34: #{tpu_custom_call.1} parent=1 // pred_check
      _
    $region35: #{tpu_custom_call.1} parent=1 // pred_check_branch
      %308 = sbr.rel (0) target = $region37
    $region36: #{tpu_custom_call.1} parent=1 // pred_region
      %310 = vsyncadd [#allocation4], 0
      %s311 = sshll.u32 [#allocation9], 4
      %s312 = int_to_ptr.vmem [resolvable:$true] %s311
      %s313 = sshll.u32 %s5, 4
      %s314 = int_to_ptr.hbm [resolvable:$true] %s313
      %319 = dma.vmem_to_hbm [thread:$0]  %s312, 256, %s314, [#allocation4], 128, 128, 8
    $region37: #{tpu_custom_call.1} parent=1 // pred_fallthru
      _
    // Predicated region
    $region38: #{tpu_custom_call.1} parent=1 // pred_check
      _
    $region39: #{tpu_custom_call.1} parent=1 // pred_check_branch
      %321 = sbr.rel (0) target = $region41
    $region40: #{tpu_custom_call.1} parent=1 // pred_region
      _
    $region41: #{tpu_custom_call.1} parent=1 // pred_fallthru
      _
    // Predicated region
    $region42: #{tpu_custom_call.1} parent=1 // pred_check
      _
    $region43: #{tpu_custom_call.1} parent=1 // pred_check_branch
      %323 = sbr.rel (0) target = $region45
    $region44: #{tpu_custom_call.1} parent=1 // pred_region
      _
    $region45: #{tpu_custom_call.1} parent=1 // pred_fallthru
      _
    // Predicated region
    $region46: #{tpu_custom_call.1} parent=1 // pred_check
      _
    $region47: #{tpu_custom_call.1} parent=1 // pred_check_branch
      %325 = sbr.rel (0) target = $region49
    $region48: #{tpu_custom_call.1} parent=1 // pred_region
      %327 = dma.done [#allocation4], 256
    $region49: #{tpu_custom_call.1} parent=1 // pred_fallthru
      _
    // Predicated region
    $region50: #{tpu_custom_call.1} parent=1 // pred_check
      _
    $region51: #{tpu_custom_call.1} parent=1 // pred_check_branch
      %329 = sbr.rel (0) target = $region53
    $region52: #{tpu_custom_call.1} parent=1 // pred_region
      _
    $region53: #{tpu_custom_call.1} parent=1 // pred_fallthru
      _
    // Predicated region
    $region54: #{tpu_custom_call.1} parent=1 // pred_check
      _
    $region55: #{tpu_custom_call.1} parent=1 // pred_check_branch
      %331 = sbr.rel (0) target = $region57
    $region56: #{tpu_custom_call.1} parent=1 // pred_region
      _
    $region57: #{tpu_custom_call.1} parent=1 // pred_fallthru
      _
    %332 = vsyncpa [#allocation3], 1
    %333 = vsyncpa [#allocation4], 1
    %334 = vsyncpa [#allocation5], 1
    %335 = vsyncpa [#allocation7], 1

</llo_original>
